<compile_context>
chip_gen: v7x
topology: tpu7x:2x2x1
jax: 0.10.0
libtpu: 0.0.40
codegen_flags: <defaults>
</compile_context>

<pallas_src>
import functools

import jax
import jax.numpy as jnp
from jax.experimental import pallas as pl
from jax.experimental.pallas import tpu as pltpu


LANE = 128   # lane width / MXU tile edge
SUB = 16     # sublane multiple covering f32 (8) and packed bf16 (16) tiles


def _cdiv(a, b):
    return -(-a // b)


def _round_up(n, m):
    return _cdiv(n, m) * m


def mlp_kernel(x_ref, w1_ref, b1_ref, w2_ref, b2_ref, w3_ref, b3_ref, o_ref):
    # One (TB, K) batch tile per grid step; weights/biases stay VMEM-resident
    # across the whole grid (index_maps always return block (0, 0)).
    # x arrives f32 and is cast to bf16 on the VPU here (overlaps MXU work)
    # instead of in a separate XLA pass over all of HBM.
    x = x_ref[...].astype(jnp.bfloat16)                                # (TB, K)
    h1 = jnp.dot(x, w1_ref[...], preferred_element_type=jnp.float32) + b1_ref[...]
    h1 = jnp.maximum(h1, 0.0).astype(jnp.bfloat16)     # ReLU in f32, bf16 MXU feed
    h2 = jnp.dot(h1, w2_ref[...], preferred_element_type=jnp.float32) + b2_ref[...]
    h2 = jnp.maximum(h2, 0.0).astype(jnp.bfloat16)
    out = jnp.dot(h2, w3_ref[...], preferred_element_type=jnp.float32) + b3_ref[...]
    o_ref[...] = out.astype(o_ref.dtype)               # lane-dense (TB, 128) store


def _pick_tile(B, tb):
    """Tile height: big enough to amortize ~0.35us/grid-step, small enough for
    VMEM, >=2 tiles when possible (v7x megacore), sublane-rounded for tiny B."""
    mult = LANE if B >= 2 * LANE else SUB     # don't blow B=2 up to 128 rows
    n_tiles = _cdiv(B, tb)
    if B > mult:                              # enough rows to split across 2 TCs
        n_tiles = max(n_tiles, 2)
    return _round_up(_cdiv(B, n_tiles), mult)


def linear_net_forward(x_nchw, params, *, tb=1024):
    """x_nchw: (B, C, H, W) float32. Returns (B, num_classes) float32."""
    w1, b1, w2, b2, w3, b3 = params
    num_classes = w3.shape[1]
    nc_pad = _round_up(num_classes, LANE)

    B = x_nchw.shape[0]
    K = int(x_nchw.size // B)
    x2d = x_nchw.reshape(B, -1)    # == torch .view(B, -1); stays f32, no extra HBM pass

    TB = _pick_tile(B, tb)
    grid = (_cdiv(B, TB),)         # ragged tail handled by Pallas (OOB reads are
                                   # garbage rows; OOB writes dropped; rows independent)

    # bf16 weights (f32 accumulation in-kernel); pad layer-3 to a 128-lane
    # output slab so the store is an unmasked lane-dense vst (sliced off below).
    w1b = w1.astype(jnp.bfloat16)
    w2b = w2.astype(jnp.bfloat16)
    w3b = jnp.pad(w3, ((0, 0), (0, nc_pad - num_classes))).astype(jnp.bfloat16)
    b3p = jnp.pad(b3, ((0, 0), (0, nc_pad - num_classes)))   # f32

    resident = lambda i: (0, 0)    # same block every grid step -> stays in VMEM
    res_spec = lambda arr: pl.BlockSpec(arr.shape, resident,
                                        pipeline_mode=pl.Buffered(1))

    out = pl.pallas_call(
        mlp_kernel,
        out_shape=jax.ShapeDtypeStruct((B, nc_pad), jnp.bfloat16),
        grid_spec=pltpu.PrefetchScalarGridSpec(
            num_scalar_prefetch=0,
            grid=grid,
            in_specs=[
                pl.BlockSpec((TB, K), lambda i: (i, 0)),   # x: tiled over batch
                res_spec(w1b), res_spec(b1),
                res_spec(w2b), res_spec(b2),
                res_spec(w3b), res_spec(b3p),
            ],
            out_specs=pl.BlockSpec((TB, nc_pad), lambda i: (i, 0)),
        ),
        compiler_params=pltpu.CompilerParams(
            # batch tiles shard across TCs on v7x; grid has no reduction axis
            dimension_semantics=("parallel",),
            # TB=1024 f32 x tiles (double-buffered) + resident weights +
            # intermediates ~ 16-20 MiB: above v5e's 16 MiB default scoped
            # VMEM, comfortably below v7x's 64 MiB physical (and v5e/v6e 128).
            vmem_limit_bytes=48 * 1024 * 1024,
        ),
    )(x2d, w1b, b1, w2b, b2, w3b, b3p)

    # Slice off lane padding / any tail rows; logits back to f32 (tiny op,
    # values were f32-accumulated in the MXU).
    return out[:B, :num_classes].astype(jnp.float32)


def init_params(key, input_size, num_classes):
    """Deterministic init mimicking nn.Linear's uniform(-1/sqrt(fan_in), +).

    Master params kept in f32 (like PyTorch); the wrapper casts/pads."""
    dims = [(input_size, 256), (256, 128), (128, num_classes)]
    params = []
    for fan_in, fan_out in dims:
        kw, kb, key = jax.random.split(key, 3)
        bound = 1.0 / jnp.sqrt(float(fan_in))
        w = jax.random.uniform(kw, (fan_in, fan_out), jnp.float32, -bound, bound)
        b = jax.random.uniform(kb, (1, fan_out), jnp.float32, -bound, bound)
        params += [w, b]
    return tuple(params)


def reference_forward(x_nchw, params):
    w1, b1, w2, b2, w3, b3 = params
    x = x_nchw.reshape(x_nchw.shape[0], -1)
    h1 = jnp.maximum(x @ w1 + b1, 0.0)
    h2 = jnp.maximum(h1 @ w2 + b2, 0.0)
    return h2 @ w3 + b3


if __name__ == "__main__":
    key = jax.random.PRNGKey(0)
    kx, kp = jax.random.split(key)

    B, C, H, W = 2, 4, 16, 16          # input_size = C*H*W = 1024
    num_classes = 10

    x = jax.random.normal(kx, (B, C, H, W), jnp.float32)
    params = init_params(kp, C * H * W, num_classes)

    fwd = jax.jit(functools.partial(linear_net_forward, tb=1024))
    out = jax.block_until_ready(fwd(x, params))

    ref = reference_forward(x, params)
    assert out.shape == (B, num_classes)
    assert out.dtype == jnp.float32
    # bf16 MXU feeds + bf16 output slab (f32 accumulation): loose tolerance.
    assert jnp.allclose(out, ref, atol=5e-2, rtol=5e-2), (
        float(jnp.max(jnp.abs(out - ref)))
    )

    print("KERNEL_OK")
</pallas_src>

<mosaic_0001>
module attributes {stable_mosaic.version = 11 : i64} {
  func.func @mlp_kernel(%arg0: i32, %arg1: memref<16x1024xf32, #tpu.memory_space<vmem>>, %arg2: memref<1024x256xbf16, #tpu.memory_space<vmem>>, %arg3: memref<1x256xf32, #tpu.memory_space<vmem>>, %arg4: memref<256x128xbf16, #tpu.memory_space<vmem>>, %arg5: memref<1x128xf32, #tpu.memory_space<vmem>>, %arg6: memref<128x128xbf16, #tpu.memory_space<vmem>>, %arg7: memref<1x128xf32, #tpu.memory_space<vmem>>, %arg8: memref<16x128xbf16, #tpu.memory_space<vmem>>) attributes {dimension_semantics = [#tpu.dimension_semantics<parallel>], iteration_bounds = array<i64: 1>, scalar_prefetch = 0 : i64, scratch_operands = 0 : i64, tpu.core_type = #tpu.core_type<tc>, window_params = [{transform_indices = @transform_0, window_bounds = array<i64: 16, 1024>}, {pipeline_mode = #tpu.pipeline_mode<synchronous>, transform_indices = @transform_1, window_bounds = array<i64: 1024, 256>}, {pipeline_mode = #tpu.pipeline_mode<synchronous>, transform_indices = @transform_2, window_bounds = array<i64: 1, 256>}, {pipeline_mode = #tpu.pipeline_mode<synchronous>, transform_indices = @transform_3, window_bounds = array<i64: 256, 128>}, {pipeline_mode = #tpu.pipeline_mode<synchronous>, transform_indices = @transform_4, window_bounds = array<i64: 1, 128>}, {pipeline_mode = #tpu.pipeline_mode<synchronous>, transform_indices = @transform_5, window_bounds = array<i64: 128, 128>}, {pipeline_mode = #tpu.pipeline_mode<synchronous>, transform_indices = @transform_6, window_bounds = array<i64: 1, 128>}, {transform_indices = @transform_7, window_bounds = array<i64: 16, 128>}]} {
    %c0 = arith.constant 0 : index
    %c0_0 = arith.constant 0 : index
    %0 = vector.load %arg1[%c0, %c0_0] : memref<16x1024xf32, #tpu.memory_space<vmem>>, vector<16x1024xf32>
    %1 = arith.truncf %0 : vector<16x1024xf32> to vector<16x1024xbf16>
    %c0_1 = arith.constant 0 : index
    %c0_2 = arith.constant 0 : index
    %2 = vector.load %arg2[%c0_1, %c0_2] : memref<1024x256xbf16, #tpu.memory_space<vmem>>, vector<1024x256xbf16>
    %cst = arith.constant dense<0.000000e+00> : vector<16x256xf32>
    %3 = tpu.matmul %1, %2, %cst {dimension_numbers = #tpu.dot_dimension_numbers<[1], [0], [0], [1], [0, 0, 1, 1], [], []>} : vector<16x1024xbf16>, vector<1024x256xbf16>, vector<16x256xf32> -> vector<16x256xf32>
    %c0_3 = arith.constant 0 : index
    %c0_4 = arith.constant 0 : index
    %4 = vector.load %arg3[%c0_3, %c0_4] : memref<1x256xf32, #tpu.memory_space<vmem>>, vector<1x256xf32>
    %5 = vector.broadcast %4 : vector<1x256xf32> to vector<16x256xf32>
    %6 = arith.addf %3, %5 : vector<16x256xf32>
    %cst_5 = arith.constant 0.000000e+00 : f32
    %7 = vector.broadcast %cst_5 : f32 to vector<16x256xf32>
    %8 = arith.maximumf %6, %7 : vector<16x256xf32>
    %9 = arith.truncf %8 : vector<16x256xf32> to vector<16x256xbf16>
    %c0_6 = arith.constant 0 : index
    %c0_7 = arith.constant 0 : index
    %10 = vector.load %arg4[%c0_6, %c0_7] : memref<256x128xbf16, #tpu.memory_space<vmem>>, vector<256x128xbf16>
    %cst_8 = arith.constant dense<0.000000e+00> : vector<16x128xf32>
    %11 = tpu.matmul %9, %10, %cst_8 {dimension_numbers = #tpu.dot_dimension_numbers<[1], [0], [0], [1], [0, 0, 1, 1], [], []>} : vector<16x256xbf16>, vector<256x128xbf16>, vector<16x128xf32> -> vector<16x128xf32>
    %c0_9 = arith.constant 0 : index
    %c0_10 = arith.constant 0 : index
    %12 = vector.load %arg5[%c0_9, %c0_10] : memref<1x128xf32, #tpu.memory_space<vmem>>, vector<1x128xf32>
    %13 = vector.broadcast %12 : vector<1x128xf32> to vector<16x128xf32>
    %14 = arith.addf %11, %13 : vector<16x128xf32>
    %cst_11 = arith.constant 0.000000e+00 : f32
    %15 = vector.broadcast %cst_11 : f32 to vector<16x128xf32>
    %16 = arith.maximumf %14, %15 : vector<16x128xf32>
    %17 = arith.truncf %16 : vector<16x128xf32> to vector<16x128xbf16>
    %c0_12 = arith.constant 0 : index
    %c0_13 = arith.constant 0 : index
    %18 = vector.load %arg6[%c0_12, %c0_13] : memref<128x128xbf16, #tpu.memory_space<vmem>>, vector<128x128xbf16>
    %cst_14 = arith.constant dense<0.000000e+00> : vector<16x128xf32>
    %19 = tpu.matmul %17, %18, %cst_14 {dimension_numbers = #tpu.dot_dimension_numbers<[1], [0], [0], [1], [0, 0, 1, 1], [], []>} : vector<16x128xbf16>, vector<128x128xbf16>, vector<16x128xf32> -> vector<16x128xf32>
    %c0_15 = arith.constant 0 : index
    %c0_16 = arith.constant 0 : index
    %20 = vector.load %arg7[%c0_15, %c0_16] : memref<1x128xf32, #tpu.memory_space<vmem>>, vector<1x128xf32>
    %21 = vector.broadcast %20 : vector<1x128xf32> to vector<16x128xf32>
    %22 = arith.addf %19, %21 : vector<16x128xf32>
    %23 = arith.truncf %22 : vector<16x128xf32> to vector<16x128xbf16>
    %c0_17 = arith.constant 0 : index
    %c0_18 = arith.constant 0 : index
    %24 = vector.load %arg8[%c0_17, %c0_18] : memref<16x128xbf16, #tpu.memory_space<vmem>>, vector<16x128xbf16>
    tpu.vector_store %arg8[%c0_17, %c0_18], %23 {strides = array<i32>} : memref<16x128xbf16, #tpu.memory_space<vmem>>, vector<16x128xbf16>,
    return
  }
  func.func @transform_0(%arg0: i32) -> (i32, i32) {
    %c0_i32 = arith.constant 0 : i32
    %c0_i32_0 = arith.constant 0 : i32
    return %arg0, %c0_i32 : i32, i32
  }
  func.func @transform_1(%arg0: i32) -> (i32, i32) {
    %c0_i32 = arith.constant 0 : i32
    %c0_i32_0 = arith.constant 0 : i32
    %c0_i32_1 = arith.constant 0 : i32
    return %c0_i32, %c0_i32_0 : i32, i32
  }
  func.func @transform_2(%arg0: i32) -> (i32, i32) {
    %c0_i32 = arith.constant 0 : i32
    %c0_i32_0 = arith.constant 0 : i32
    %c0_i32_1 = arith.constant 0 : i32
    return %c0_i32, %c0_i32_0 : i32, i32
  }
  func.func @transform_3(%arg0: i32) -> (i32, i32) {
    %c0_i32 = arith.constant 0 : i32
    %c0_i32_0 = arith.constant 0 : i32
    %c0_i32_1 = arith.constant 0 : i32
    return %c0_i32, %c0_i32_0 : i32, i32
  }
  func.func @transform_4(%arg0: i32) -> (i32, i32) {
    %c0_i32 = arith.constant 0 : i32
    %c0_i32_0 = arith.constant 0 : i32
    %c0_i32_1 = arith.constant 0 : i32
    return %c0_i32, %c0_i32_0 : i32, i32
  }
  func.func @transform_5(%arg0: i32) -> (i32, i32) {
    %c0_i32 = arith.constant 0 : i32
    %c0_i32_0 = arith.constant 0 : i32
    %c0_i32_1 = arith.constant 0 : i32
    return %c0_i32, %c0_i32_0 : i32, i32
  }
  func.func @transform_6(%arg0: i32) -> (i32, i32) {
    %c0_i32 = arith.constant 0 : i32
    %c0_i32_0 = arith.constant 0 : i32
    %c0_i32_1 = arith.constant 0 : i32
    return %c0_i32, %c0_i32_0 : i32, i32
  }
  func.func @transform_7(%arg0: i32) -> (i32, i32) {
    %c0_i32 = arith.constant 0 : i32
    %c0_i32_0 = arith.constant 0 : i32
    return %arg0, %c0_i32 : i32, i32
  }
}

</mosaic_0001>

<llo_original>
// kernel: linear_net_forward.1
$region0: #{linear_net_forward.1}
  #allocation0 [shape = 'u32[]', space=smem, size = 0x4, offset = 0x4, fixed_abs, tag = 'smem constant byte address 0x4 - core index']
  #allocation1 [shape = 'u32[144,128]{1,0:T(1,128)}', space=vmem, size = 0x12000, scoped, tag = 'internal scratch']
  %s0 = inlined_call_operand.vmem [shape: f32[2,1024], index: 0, kind: input, shape index: {}]
  %s1 = inlined_call_operand.vmem [shape: bf16[1024,256], index: 1, kind: input, shape index: {}]
  %s2 = inlined_call_operand.vmem [shape: f32[1,256], index: 2, kind: input, shape index: {}]
  %s3 = inlined_call_operand.vmem [shape: bf16[256,128], index: 3, kind: input, shape index: {}]
  %s4 = inlined_call_operand.vmem [shape: f32[1,128], index: 4, kind: input, shape index: {}]
  %s5 = inlined_call_operand.vmem [shape: bf16[128,128], index: 5, kind: input, shape index: {}]
  %s6 = inlined_call_operand.vmem [shape: f32[1,128], index: 6, kind: input, shape index: {}]
  %s7 = inlined_call_operand.vmem [shape: bf16[2,128], index: 7, kind: output, shape index: {}]
  %s8 = sld [smem:[#allocation0]]
  $region68: #{linear_net_forward.1} parent=0
    _
  %s10 = ssub.s32 1, %s8
  %s11 = scalar_select 0, %s10, %s8
  $region1: #{linear_net_forward.1} parent=0
    #allocation2 [shape = 'u8[4096]{0}', space=vmem, size = 0x1000, scoped, tag = 'output window, operand 0, single buffered']
    // Predicated region
    $region2: #{linear_net_forward.1} parent=1 // pred_check
      _
    $region3: #{linear_net_forward.1} parent=1 // pred_check_branch
      %13 = sbr.rel (0) target = $region5
    $region4: #{linear_net_forward.1} parent=1 // pred_region
      _
    $region5: #{linear_net_forward.1} parent=1 // pred_fallthru
      _
    // Predicated region
    $region6: #{linear_net_forward.1} parent=1 // pred_check
      _
    $region7: #{linear_net_forward.1} parent=1 // pred_check_branch
      %15 = sbr.rel (0) target = $region9
    $region8: #{linear_net_forward.1} parent=1 // pred_region
      _
    $region9: #{linear_net_forward.1} parent=1 // pred_fallthru
      _
    // Predicated region
    $region10: #{linear_net_forward.1} parent=1 // pred_check
      _
    $region11: #{linear_net_forward.1} parent=1 // pred_check_branch
      %17 = sbr.rel (0) target = $region13
    $region12: #{linear_net_forward.1} parent=1 // pred_region
      _
    $region13: #{linear_net_forward.1} parent=1 // pred_fallthru
      _
    // Predicated region
    $region14: #{linear_net_forward.1} parent=1 // pred_check
      _
    $region15: #{linear_net_forward.1} parent=1 // pred_check_branch
      %19 = sbr.rel (0) target = $region17
    $region16: #{linear_net_forward.1} parent=1 // pred_region
      _
    $region17: #{linear_net_forward.1} parent=1 // pred_fallthru
      _
    // Predicated region
    $region18: #{linear_net_forward.1} parent=1 // pred_check
      _
    $region19: #{linear_net_forward.1} parent=1 // pred_check_branch
      %21 = sbr.rel (0) target = $region21
    $region20: #{linear_net_forward.1} parent=1 // pred_region
      _
    $region21: #{linear_net_forward.1} parent=1 // pred_fallthru
      _
    // Predicated region
    $region22: #{linear_net_forward.1} parent=1 // pred_check
      _
    $region23: #{linear_net_forward.1} parent=1 // pred_check_branch
      %23 = sbr.rel (0) target = $region25
    $region24: #{linear_net_forward.1} parent=1 // pred_region
      _
    $region25: #{linear_net_forward.1} parent=1 // pred_fallthru
      _
    // Predicated region
    $region26: #{linear_net_forward.1} parent=1 // pred_check
      _
    $region27: #{linear_net_forward.1} parent=1 // pred_check_branch
      %25 = sbr.rel (0) target = $region29
    $region28: #{linear_net_forward.1} parent=1 // pred_region
      _
    $region29: #{linear_net_forward.1} parent=1 // pred_fallthru
      _
    %v27 = vld [vmem:[%s0] sm:$0xff]
    %v28 = vld [vmem:[%s0 + $0x8] sm:$0xff]
    %v29 = vld [vmem:[%s0 + $0x10] sm:$0xff]
    %v30 = vld [vmem:[%s0 + $0x18] sm:$0xff]
    %v31 = vld [vmem:[%s0 + $0x20] sm:$0xff]
    %v32 = vld [vmem:[%s0 + $0x28] sm:$0xff]
    %v33 = vld [vmem:[%s0 + $0x30] sm:$0xff]
    %v34 = vld [vmem:[%s0 + $0x38] sm:$0xff]
    %v35 = vld [vmem:[%s0 + $0x40] sm:$0xff]
    %v36 = vld [vmem:[%s0 + $0x48] sm:$0xff]
    %v37 = vld [vmem:[%s0 + $0x50] sm:$0xff]
    %v38 = vld [vmem:[%s0 + $0x58] sm:$0xff]
    %v39 = vld [vmem:[%s0 + $0x60] sm:$0xff]
    %v40 = vld [vmem:[%s0 + $0x68] sm:$0xff]
    %v41 = vld [vmem:[%s0 + $0x70] sm:$0xff]
    %v42 = vld [vmem:[%s0 + $0x78] sm:$0xff]
    %v59 = vcombine.low %v27, %v29
    %v60 = vcombine.high %v27, %v29
    %v61 = vcombine.low %v31, %v33
    %v62 = vcombine.high %v31, %v33
    %v64 = vunpack.c.l.s4 1983009808
    %v65 = vunpack.c.0.s8 %v64
    %v66 = vlaneseq
    %v67 = vshrl.u32 %v66, 7
    %v68 = vsub.s32 %v65, %v67
    %v69 = vrot.slane %v59, %v68
    %v71 = vunpack.c.l.s4 1983009808
    %v72 = vunpack.c.0.s8 %v71
    %v73 = vlaneseq
    %v74 = vshrl.u32 %v73, 7
    %v75 = vsub.s32 %v72, %v74
    %v76 = vrot.slane %v60, %v75
    %v78 = vunpack.c.l.s4 1983009808
    %v79 = vunpack.c.0.s8 %v78
    %v80 = vlaneseq
    %v81 = vshrl.u32 %v80, 7
    %v82 = vsub.s32 %v79, %v81
    %v83 = vrot.slane %v61, %v82
    %v85 = vunpack.c.l.s4 1983009808
    %v86 = vunpack.c.0.s8 %v85
    %v87 = vlaneseq
    %v88 = vshrl.u32 %v87, 7
    %v89 = vsub.s32 %v86, %v88
    %v90 = vrot.slane %v62, %v89
    %v91 = vcombine.low %v69, %v83
    %v92 = vcombine.high %v69, %v83
    %v93 = vcombine.low %v76, %v90
    %v94 = vcombine.high %v76, %v90
    %v95 = vcombine.low %v28, %v30
    %v96 = vcombine.high %v28, %v30
    %v97 = vcombine.low %v32, %v34
    %v98 = vcombine.high %v32, %v34
    %v100 = vunpack.c.l.s4 1983009808
    %v101 = vunpack.c.0.s8 %v100
    %v102 = vlaneseq
    %v103 = vshrl.u32 %v102, 7
    %v104 = vsub.s32 %v101, %v103
    %v105 = vrot.slane %v95, %v104
    %v107 = vunpack.c.l.s4 1983009808
    %v108 = vunpack.c.0.s8 %v107
    %v109 = vlaneseq
    %v110 = vshrl.u32 %v109, 7
    %v111 = vsub.s32 %v108, %v110
    %v112 = vrot.slane %v96, %v111
    %v114 = vunpack.c.l.s4 1983009808
    %v115 = vunpack.c.0.s8 %v114
    %v116 = vlaneseq
    %v117 = vshrl.u32 %v116, 7
    %v118 = vsub.s32 %v115, %v117
    %v119 = vrot.slane %v97, %v118
    %v121 = vunpack.c.l.s4 1983009808
    %v122 = vunpack.c.0.s8 %v121
    %v123 = vlaneseq
    %v124 = vshrl.u32 %v123, 7
    %v125 = vsub.s32 %v122, %v124
    %v126 = vrot.slane %v98, %v125
    %v127 = vcombine.low %v105, %v119
    %v128 = vcombine.high %v105, %v119
    %v129 = vcombine.low %v112, %v126
    %v130 = vcombine.high %v112, %v126
    %v131 = vcombine.low %v35, %v37
    %v132 = vcombine.high %v35, %v37
    %v133 = vcombine.low %v39, %v41
    %v134 = vcombine.high %v39, %v41
    %v136 = vunpack.c.l.s4 1983009808
    %v137 = vunpack.c.0.s8 %v136
    %v138 = vlaneseq
    %v139 = vshrl.u32 %v138, 7
    %v140 = vsub.s32 %v137, %v139
    %v141 = vrot.slane %v131, %v140
    %v143 = vunpack.c.l.s4 1983009808
    %v144 = vunpack.c.0.s8 %v143
    %v145 = vlaneseq
    %v146 = vshrl.u32 %v145, 7
    %v147 = vsub.s32 %v144, %v146
    %v148 = vrot.slane %v132, %v147
    %v150 = vunpack.c.l.s4 1983009808
    %v151 = vunpack.c.0.s8 %v150
    %v152 = vlaneseq
    %v153 = vshrl.u32 %v152, 7
    %v154 = vsub.s32 %v151, %v153
    %v155 = vrot.slane %v133, %v154
    %v157 = vunpack.c.l.s4 1983009808
    %v158 = vunpack.c.0.s8 %v157
    %v159 = vlaneseq
    %v160 = vshrl.u32 %v159, 7
    %v161 = vsub.s32 %v158, %v160
    %v162 = vrot.slane %v134, %v161
    %v163 = vcombine.low %v141, %v155
    %v164 = vcombine.high %v141, %v155
    %v165 = vcombine.low %v148, %v162
    %v166 = vcombine.high %v148, %v162
    %v167 = vcombine.low %v36, %v38
    %v168 = vcombine.high %v36, %v38
    %v169 = vcombine.low %v40, %v42
    %v170 = vcombine.high %v40, %v42
    %v172 = vunpack.c.l.s4 1983009808
    %v173 = vunpack.c.0.s8 %v172
    %v174 = vlaneseq
    %v175 = vshrl.u32 %v174, 7
    %v176 = vsub.s32 %v173, %v175
    %v177 = vrot.slane %v167, %v176
    %v179 = vunpack.c.l.s4 1983009808
    %v180 = vunpack.c.0.s8 %v179
    %v181 = vlaneseq
    %v182 = vshrl.u32 %v181, 7
    %v183 = vsub.s32 %v180, %v182
    %v184 = vrot.slane %v168, %v183
    %v186 = vunpack.c.l.s4 1983009808
    %v187 = vunpack.c.0.s8 %v186
    %v188 = vlaneseq
    %v189 = vshrl.u32 %v188, 7
    %v190 = vsub.s32 %v187, %v189
    %v191 = vrot.slane %v169, %v190
    %v193 = vunpack.c.l.s4 1983009808
    %v194 = vunpack.c.0.s8 %v193
    %v195 = vlaneseq
    %v196 = vshrl.u32 %v195, 7
    %v197 = vsub.s32 %v194, %v196
    %v198 = vrot.slane %v170, %v197
    %v199 = vcombine.low %v177, %v191
    %v200 = vcombine.high %v177, %v191
    %v201 = vcombine.low %v184, %v198
    %v202 = vcombine.high %v184, %v198
    %v219 = vpack.c.bf16 %v163, %v91
    %v220 = vpack.c.bf16 %v164, %v92
    %v221 = vpack.c.bf16 %v165, %v93
    %v222 = vpack.c.bf16 %v166, %v94
    %v223 = vpack.c.bf16 %v199, %v127
    %v224 = vpack.c.bf16 %v200, %v128
    %v225 = vpack.c.bf16 %v201, %v129
    %v226 = vpack.c.bf16 %v202, %v130
    %v227 = vld [vmem:[%s1] sm:$0xff]
    %v228 = vld [vmem:[%s1 + $0x8] sm:$0xff]
    %v229 = vld [vmem:[%s1 + $0x10] sm:$0xff]
    %v230 = vld [vmem:[%s1 + $0x18] sm:$0xff]
    %v231 = vld [vmem:[%s1 + $0x20] sm:$0xff]
    %v232 = vld [vmem:[%s1 + $0x28] sm:$0xff]
    %v233 = vld [vmem:[%s1 + $0x30] sm:$0xff]
    %v234 = vld [vmem:[%s1 + $0x38] sm:$0xff]
    %v235 = vld [vmem:[%s1 + $0x40] sm:$0xff]
    %v236 = vld [vmem:[%s1 + $0x48] sm:$0xff]
    %v237 = vld [vmem:[%s1 + $0x50] sm:$0xff]
    %v238 = vld [vmem:[%s1 + $0x58] sm:$0xff]
    %v239 = vld [vmem:[%s1 + $0x60] sm:$0xff]
    %v240 = vld [vmem:[%s1 + $0x68] sm:$0xff]
    %v241 = vld [vmem:[%s1 + $0x70] sm:$0xff]
    %v242 = vld [vmem:[%s1 + $0x78] sm:$0xff]
    %v243 = vld [vmem:[%s1 + $0x80] sm:$0xff]
    %v244 = vld [vmem:[%s1 + $0x88] sm:$0xff]
    %v245 = vld [vmem:[%s1 + $0x90] sm:$0xff]
    %v246 = vld [vmem:[%s1 + $0x98] sm:$0xff]
    %v247 = vld [vmem:[%s1 + $0xa0] sm:$0xff]
    %v248 = vld [vmem:[%s1 + $0xa8] sm:$0xff]
    %v249 = vld [vmem:[%s1 + $0xb0] sm:$0xff]
    %v250 = vld [vmem:[%s1 + $0xb8] sm:$0xff]
    %v251 = vld [vmem:[%s1 + $0xc0] sm:$0xff]
    %v252 = vld [vmem:[%s1 + $0xc8] sm:$0xff]
    %v253 = vld [vmem:[%s1 + $0xd0] sm:$0xff]
    %v254 = vld [vmem:[%s1 + $0xd8] sm:$0xff]
    %v255 = vld [vmem:[%s1 + $0xe0] sm:$0xff]
    %v256 = vld [vmem:[%s1 + $0xe8] sm:$0xff]
    %v257 = vld [vmem:[%s1 + $0xf0] sm:$0xff]
    %v258 = vld [vmem:[%s1 + $0xf8] sm:$0xff]
    %v259 = vld [vmem:[%s1 + $0x100] sm:$0xff]
    %v260 = vld [vmem:[%s1 + $0x108] sm:$0xff]
    %v261 = vld [vmem:[%s1 + $0x110] sm:$0xff]
    %v262 = vld [vmem:[%s1 + $0x118] sm:$0xff]
    %v263 = vld [vmem:[%s1 + $0x120] sm:$0xff]
    %v264 = vld [vmem:[%s1 + $0x128] sm:$0xff]
    %v265 = vld [vmem:[%s1 + $0x130] sm:$0xff]
    %v266 = vld [vmem:[%s1 + $0x138] sm:$0xff]
    %v267 = vld [vmem:[%s1 + $0x140] sm:$0xff]
    %v268 = vld [vmem:[%s1 + $0x148] sm:$0xff]
    %v269 = vld [vmem:[%s1 + $0x150] sm:$0xff]
    %v270 = vld [vmem:[%s1 + $0x158] sm:$0xff]
    %v271 = vld [vmem:[%s1 + $0x160] sm:$0xff]
    %v272 = vld [vmem:[%s1 + $0x168] sm:$0xff]
    %v273 = vld [vmem:[%s1 + $0x170] sm:$0xff]
    %v274 = vld [vmem:[%s1 + $0x178] sm:$0xff]
    %v275 = vld [vmem:[%s1 + $0x180] sm:$0xff]
    %v276 = vld [vmem:[%s1 + $0x188] sm:$0xff]
    %v277 = vld [vmem:[%s1 + $0x190] sm:$0xff]
    %v278 = vld [vmem:[%s1 + $0x198] sm:$0xff]
    %v279 = vld [vmem:[%s1 + $0x1a0] sm:$0xff]
    %v280 = vld [vmem:[%s1 + $0x1a8] sm:$0xff]
    %v281 = vld [vmem:[%s1 + $0x1b0] sm:$0xff]
    %v282 = vld [vmem:[%s1 + $0x1b8] sm:$0xff]
    %v283 = vld [vmem:[%s1 + $0x1c0] sm:$0xff]
    %v284 = vld [vmem:[%s1 + $0x1c8] sm:$0xff]
    %v285 = vld [vmem:[%s1 + $0x1d0] sm:$0xff]
    %v286 = vld [vmem:[%s1 + $0x1d8] sm:$0xff]
    %v287 = vld [vmem:[%s1 + $0x1e0] sm:$0xff]
    %v288 = vld [vmem:[%s1 + $0x1e8] sm:$0xff]
    %v289 = vld [vmem:[%s1 + $0x1f0] sm:$0xff]
    %v290 = vld [vmem:[%s1 + $0x1f8] sm:$0xff]
    %v291 = vld [vmem:[%s1 + $0x200] sm:$0xff]
    %v292 = vld [vmem:[%s1 + $0x208] sm:$0xff]
    %v293 = vld [vmem:[%s1 + $0x210] sm:$0xff]
    %v294 = vld [vmem:[%s1 + $0x218] sm:$0xff]
    %v295 = vld [vmem:[%s1 + $0x220] sm:$0xff]
    %v296 = vld [vmem:[%s1 + $0x228] sm:$0xff]
    %v297 = vld [vmem:[%s1 + $0x230] sm:$0xff]
    %v298 = vld [vmem:[%s1 + $0x238] sm:$0xff]
    %v299 = vld [vmem:[%s1 + $0x240] sm:$0xff]
    %v300 = vld [vmem:[%s1 + $0x248] sm:$0xff]
    %v301 = vld [vmem:[%s1 + $0x250] sm:$0xff]
    %v302 = vld [vmem:[%s1 + $0x258] sm:$0xff]
    %v303 = vld [vmem:[%s1 + $0x260] sm:$0xff]
    %v304 = vld [vmem:[%s1 + $0x268] sm:$0xff]
    %v305 = vld [vmem:[%s1 + $0x270] sm:$0xff]
    %v306 = vld [vmem:[%s1 + $0x278] sm:$0xff]
    %v307 = vld [vmem:[%s1 + $0x280] sm:$0xff]
    %v308 = vld [vmem:[%s1 + $0x288] sm:$0xff]
    %v309 = vld [vmem:[%s1 + $0x290] sm:$0xff]
    %v310 = vld [vmem:[%s1 + $0x298] sm:$0xff]
    %v311 = vld [vmem:[%s1 + $0x2a0] sm:$0xff]
    %v312 = vld [vmem:[%s1 + $0x2a8] sm:$0xff]
    %v313 = vld [vmem:[%s1 + $0x2b0] sm:$0xff]
    %v314 = vld [vmem:[%s1 + $0x2b8] sm:$0xff]
    %v315 = vld [vmem:[%s1 + $0x2c0] sm:$0xff]
    %v316 = vld [vmem:[%s1 + $0x2c8] sm:$0xff]
    %v317 = vld [vmem:[%s1 + $0x2d0] sm:$0xff]
    %v318 = vld [vmem:[%s1 + $0x2d8] sm:$0xff]
    %v319 = vld [vmem:[%s1 + $0x2e0] sm:$0xff]
    %v320 = vld [vmem:[%s1 + $0x2e8] sm:$0xff]
    %v321 = vld [vmem:[%s1 + $0x2f0] sm:$0xff]
    %v322 = vld [vmem:[%s1 + $0x2f8] sm:$0xff]
    %v323 = vld [vmem:[%s1 + $0x300] sm:$0xff]
    %v324 = vld [vmem:[%s1 + $0x308] sm:$0xff]
    %v325 = vld [vmem:[%s1 + $0x310] sm:$0xff]
    %v326 = vld [vmem:[%s1 + $0x318] sm:$0xff]
    %v327 = vld [vmem:[%s1 + $0x320] sm:$0xff]
    %v328 = vld [vmem:[%s1 + $0x328] sm:$0xff]
    %v329 = vld [vmem:[%s1 + $0x330] sm:$0xff]
    %v330 = vld [vmem:[%s1 + $0x338] sm:$0xff]
    %v331 = vld [vmem:[%s1 + $0x340] sm:$0xff]
    %v332 = vld [vmem:[%s1 + $0x348] sm:$0xff]
    %v333 = vld [vmem:[%s1 + $0x350] sm:$0xff]
    %v334 = vld [vmem:[%s1 + $0x358] sm:$0xff]
    %v335 = vld [vmem:[%s1 + $0x360] sm:$0xff]
    %v336 = vld [vmem:[%s1 + $0x368] sm:$0xff]
    %v337 = vld [vmem:[%s1 + $0x370] sm:$0xff]
    %v338 = vld [vmem:[%s1 + $0x378] sm:$0xff]
    %v339 = vld [vmem:[%s1 + $0x380] sm:$0xff]
    %v340 = vld [vmem:[%s1 + $0x388] sm:$0xff]
    %v341 = vld [vmem:[%s1 + $0x390] sm:$0xff]
    %v342 = vld [vmem:[%s1 + $0x398] sm:$0xff]
    %v343 = vld [vmem:[%s1 + $0x3a0] sm:$0xff]
    %v344 = vld [vmem:[%s1 + $0x3a8] sm:$0xff]
    %v345 = vld [vmem:[%s1 + $0x3b0] sm:$0xff]
    %v346 = vld [vmem:[%s1 + $0x3b8] sm:$0xff]
    %v347 = vld [vmem:[%s1 + $0x3c0] sm:$0xff]
    %v348 = vld [vmem:[%s1 + $0x3c8] sm:$0xff]
    %v349 = vld [vmem:[%s1 + $0x3d0] sm:$0xff]
    %v350 = vld [vmem:[%s1 + $0x3d8] sm:$0xff]
    %v351 = vld [vmem:[%s1 + $0x3e0] sm:$0xff]
    %v352 = vld [vmem:[%s1 + $0x3e8] sm:$0xff]
    %v353 = vld [vmem:[%s1 + $0x3f0] sm:$0xff]
    %v354 = vld [vmem:[%s1 + $0x3f8] sm:$0xff]
    %v355 = vld [vmem:[%s2] sm:$0x3]
    %v357 = vlaneseq
    %v358 = vshrl.u32 %v357, 7
    %v359 = vsub.s32 0, %v358
    %v360 = vrot.slane %v355, %v359
    %v361 = vlaneseq
    %v362 = vshrl.u32 %v361, 7
    %v363 = vsub.s32 1, %v362
    %v364 = vrot.slane %v355, %v363
    %v495 = vunpack.c.l.b16 %v227
    %v496 = vunpack.c.h.b16 %v227
    %v497 = vunpack.c.l.b16 %v228
    %v498 = vunpack.c.h.b16 %v228
    %v499 = vunpack.c.l.b16 %v229
    %v500 = vunpack.c.h.b16 %v229
    %v501 = vunpack.c.l.b16 %v230
    %v502 = vunpack.c.h.b16 %v230
    %v503 = vunpack.c.l.b16 %v231
    %v504 = vunpack.c.h.b16 %v231
    %v505 = vunpack.c.l.b16 %v232
    %v506 = vunpack.c.h.b16 %v232
    %v507 = vunpack.c.l.b16 %v233
    %v508 = vunpack.c.h.b16 %v233
    %v509 = vunpack.c.l.b16 %v234
    %v510 = vunpack.c.h.b16 %v234
    %v511 = vunpack.c.l.b16 %v235
    %v512 = vunpack.c.h.b16 %v235
    %v513 = vunpack.c.l.b16 %v236
    %v514 = vunpack.c.h.b16 %v236
    %v515 = vunpack.c.l.b16 %v237
    %v516 = vunpack.c.h.b16 %v237
    %v517 = vunpack.c.l.b16 %v238
    %v518 = vunpack.c.h.b16 %v238
    %v519 = vunpack.c.l.b16 %v239
    %v520 = vunpack.c.h.b16 %v239
    %v521 = vunpack.c.l.b16 %v240
    %v522 = vunpack.c.h.b16 %v240
    %v523 = vunpack.c.l.b16 %v241
    %v524 = vunpack.c.h.b16 %v241
    %v525 = vunpack.c.l.b16 %v242
    %v526 = vunpack.c.h.b16 %v242
    %v527 = vunpack.c.l.b16 %v243
    %v528 = vunpack.c.h.b16 %v243
    %v529 = vunpack.c.l.b16 %v244
    %v530 = vunpack.c.h.b16 %v244
    %v531 = vunpack.c.l.b16 %v245
    %v532 = vunpack.c.h.b16 %v245
    %v533 = vunpack.c.l.b16 %v246
    %v534 = vunpack.c.h.b16 %v246
    %v535 = vunpack.c.l.b16 %v247
    %v536 = vunpack.c.h.b16 %v247
    %v537 = vunpack.c.l.b16 %v248
    %v538 = vunpack.c.h.b16 %v248
    %v539 = vunpack.c.l.b16 %v249
    %v540 = vunpack.c.h.b16 %v249
    %v541 = vunpack.c.l.b16 %v250
    %v542 = vunpack.c.h.b16 %v250
    %v543 = vunpack.c.l.b16 %v251
    %v544 = vunpack.c.h.b16 %v251
    %v545 = vunpack.c.l.b16 %v252
    %v546 = vunpack.c.h.b16 %v252
    %v547 = vunpack.c.l.b16 %v253
    %v548 = vunpack.c.h.b16 %v253
    %v549 = vunpack.c.l.b16 %v254
    %v550 = vunpack.c.h.b16 %v254
    %v551 = vunpack.c.l.b16 %v255
    %v552 = vunpack.c.h.b16 %v255
    %v553 = vunpack.c.l.b16 %v256
    %v554 = vunpack.c.h.b16 %v256
    %v555 = vunpack.c.l.b16 %v257
    %v556 = vunpack.c.h.b16 %v257
    %v557 = vunpack.c.l.b16 %v258
    %v558 = vunpack.c.h.b16 %v258
    %v559 = vunpack.c.l.b16 %v259
    %v560 = vunpack.c.h.b16 %v259
    %v561 = vunpack.c.l.b16 %v260
    %v562 = vunpack.c.h.b16 %v260
    %v563 = vunpack.c.l.b16 %v261
    %v564 = vunpack.c.h.b16 %v261
    %v565 = vunpack.c.l.b16 %v262
    %v566 = vunpack.c.h.b16 %v262
    %v567 = vunpack.c.l.b16 %v263
    %v568 = vunpack.c.h.b16 %v263
    %v569 = vunpack.c.l.b16 %v264
    %v570 = vunpack.c.h.b16 %v264
    %v571 = vunpack.c.l.b16 %v265
    %v572 = vunpack.c.h.b16 %v265
    %v573 = vunpack.c.l.b16 %v266
    %v574 = vunpack.c.h.b16 %v266
    %v575 = vunpack.c.l.b16 %v267
    %v576 = vunpack.c.h.b16 %v267
    %v577 = vunpack.c.l.b16 %v268
    %v578 = vunpack.c.h.b16 %v268
    %v579 = vunpack.c.l.b16 %v269
    %v580 = vunpack.c.h.b16 %v269
    %v581 = vunpack.c.l.b16 %v270
    %v582 = vunpack.c.h.b16 %v270
    %v583 = vunpack.c.l.b16 %v271
    %v584 = vunpack.c.h.b16 %v271
    %v585 = vunpack.c.l.b16 %v272
    %v586 = vunpack.c.h.b16 %v272
    %v587 = vunpack.c.l.b16 %v273
    %v588 = vunpack.c.h.b16 %v273
    %v589 = vunpack.c.l.b16 %v274
    %v590 = vunpack.c.h.b16 %v274
    %v591 = vunpack.c.l.b16 %v275
    %v592 = vunpack.c.h.b16 %v275
    %v593 = vunpack.c.l.b16 %v276
    %v594 = vunpack.c.h.b16 %v276
    %v595 = vunpack.c.l.b16 %v277
    %v596 = vunpack.c.h.b16 %v277
    %v597 = vunpack.c.l.b16 %v278
    %v598 = vunpack.c.h.b16 %v278
    %v599 = vunpack.c.l.b16 %v279
    %v600 = vunpack.c.h.b16 %v279
    %v601 = vunpack.c.l.b16 %v280
    %v602 = vunpack.c.h.b16 %v280
    %v603 = vunpack.c.l.b16 %v281
    %v604 = vunpack.c.h.b16 %v281
    %v605 = vunpack.c.l.b16 %v282
    %v606 = vunpack.c.h.b16 %v282
    %v607 = vunpack.c.l.b16 %v283
    %v608 = vunpack.c.h.b16 %v283
    %v609 = vunpack.c.l.b16 %v284
    %v610 = vunpack.c.h.b16 %v284
    %v611 = vunpack.c.l.b16 %v285
    %v612 = vunpack.c.h.b16 %v285
    %v613 = vunpack.c.l.b16 %v286
    %v614 = vunpack.c.h.b16 %v286
    %v615 = vunpack.c.l.b16 %v287
    %v616 = vunpack.c.h.b16 %v287
    %v617 = vunpack.c.l.b16 %v288
    %v618 = vunpack.c.h.b16 %v288
    %v619 = vunpack.c.l.b16 %v289
    %v620 = vunpack.c.h.b16 %v289
    %v621 = vunpack.c.l.b16 %v290
    %v622 = vunpack.c.h.b16 %v290
    %v623 = vunpack.c.l.b16 %v291
    %v624 = vunpack.c.h.b16 %v291
    %v625 = vunpack.c.l.b16 %v292
    %v626 = vunpack.c.h.b16 %v292
    %v627 = vunpack.c.l.b16 %v293
    %v628 = vunpack.c.h.b16 %v293
    %v629 = vunpack.c.l.b16 %v294
    %v630 = vunpack.c.h.b16 %v294
    %v631 = vunpack.c.l.b16 %v295
    %v632 = vunpack.c.h.b16 %v295
    %v633 = vunpack.c.l.b16 %v296
    %v634 = vunpack.c.h.b16 %v296
    %v635 = vunpack.c.l.b16 %v297
    %v636 = vunpack.c.h.b16 %v297
    %v637 = vunpack.c.l.b16 %v298
    %v638 = vunpack.c.h.b16 %v298
    %v639 = vunpack.c.l.b16 %v299
    %v640 = vunpack.c.h.b16 %v299
    %v641 = vunpack.c.l.b16 %v300
    %v642 = vunpack.c.h.b16 %v300
    %v643 = vunpack.c.l.b16 %v301
    %v644 = vunpack.c.h.b16 %v301
    %v645 = vunpack.c.l.b16 %v302
    %v646 = vunpack.c.h.b16 %v302
    %v647 = vunpack.c.l.b16 %v303
    %v648 = vunpack.c.h.b16 %v303
    %v649 = vunpack.c.l.b16 %v304
    %v650 = vunpack.c.h.b16 %v304
    %v651 = vunpack.c.l.b16 %v305
    %v652 = vunpack.c.h.b16 %v305
    %v653 = vunpack.c.l.b16 %v306
    %v654 = vunpack.c.h.b16 %v306
    %v655 = vunpack.c.l.b16 %v307
    %v656 = vunpack.c.h.b16 %v307
    %v657 = vunpack.c.l.b16 %v308
    %v658 = vunpack.c.h.b16 %v308
    %v659 = vunpack.c.l.b16 %v309
    %v660 = vunpack.c.h.b16 %v309
    %v661 = vunpack.c.l.b16 %v310
    %v662 = vunpack.c.h.b16 %v310
    %v663 = vunpack.c.l.b16 %v311
    %v664 = vunpack.c.h.b16 %v311
    %v665 = vunpack.c.l.b16 %v312
    %v666 = vunpack.c.h.b16 %v312
    %v667 = vunpack.c.l.b16 %v313
    %v668 = vunpack.c.h.b16 %v313
    %v669 = vunpack.c.l.b16 %v314
    %v670 = vunpack.c.h.b16 %v314
    %v671 = vunpack.c.l.b16 %v315
    %v672 = vunpack.c.h.b16 %v315
    %v673 = vunpack.c.l.b16 %v316
    %v674 = vunpack.c.h.b16 %v316
    %v675 = vunpack.c.l.b16 %v317
    %v676 = vunpack.c.h.b16 %v317
    %v677 = vunpack.c.l.b16 %v318
    %v678 = vunpack.c.h.b16 %v318
    %v679 = vunpack.c.l.b16 %v319
    %v680 = vunpack.c.h.b16 %v319
    %v681 = vunpack.c.l.b16 %v320
    %v682 = vunpack.c.h.b16 %v320
    %v683 = vunpack.c.l.b16 %v321
    %v684 = vunpack.c.h.b16 %v321
    %v685 = vunpack.c.l.b16 %v322
    %v686 = vunpack.c.h.b16 %v322
    %v687 = vunpack.c.l.b16 %v323
    %v688 = vunpack.c.h.b16 %v323
    %v689 = vunpack.c.l.b16 %v324
    %v690 = vunpack.c.h.b16 %v324
    %v691 = vunpack.c.l.b16 %v325
    %v692 = vunpack.c.h.b16 %v325
    %v693 = vunpack.c.l.b16 %v326
    %v694 = vunpack.c.h.b16 %v326
    %v695 = vunpack.c.l.b16 %v327
    %v696 = vunpack.c.h.b16 %v327
    %v697 = vunpack.c.l.b16 %v328
    %v698 = vunpack.c.h.b16 %v328
    %v699 = vunpack.c.l.b16 %v329
    %v700 = vunpack.c.h.b16 %v329
    %v701 = vunpack.c.l.b16 %v330
    %v702 = vunpack.c.h.b16 %v330
    %v703 = vunpack.c.l.b16 %v331
    %v704 = vunpack.c.h.b16 %v331
    %v705 = vunpack.c.l.b16 %v332
    %v706 = vunpack.c.h.b16 %v332
    %v707 = vunpack.c.l.b16 %v333
    %v708 = vunpack.c.h.b16 %v333
    %v709 = vunpack.c.l.b16 %v334
    %v710 = vunpack.c.h.b16 %v334
    %v711 = vunpack.c.l.b16 %v335
    %v712 = vunpack.c.h.b16 %v335
    %v713 = vunpack.c.l.b16 %v336
    %v714 = vunpack.c.h.b16 %v336
    %v715 = vunpack.c.l.b16 %v337
    %v716 = vunpack.c.h.b16 %v337
    %v717 = vunpack.c.l.b16 %v338
    %v718 = vunpack.c.h.b16 %v338
    %v719 = vunpack.c.l.b16 %v339
    %v720 = vunpack.c.h.b16 %v339
    %v721 = vunpack.c.l.b16 %v340
    %v722 = vunpack.c.h.b16 %v340
    %v723 = vunpack.c.l.b16 %v341
    %v724 = vunpack.c.h.b16 %v341
    %v725 = vunpack.c.l.b16 %v342
    %v726 = vunpack.c.h.b16 %v342
    %v727 = vunpack.c.l.b16 %v343
    %v728 = vunpack.c.h.b16 %v343
    %v729 = vunpack.c.l.b16 %v344
    %v730 = vunpack.c.h.b16 %v344
    %v731 = vunpack.c.l.b16 %v345
    %v732 = vunpack.c.h.b16 %v345
    %v733 = vunpack.c.l.b16 %v346
    %v734 = vunpack.c.h.b16 %v346
    %v735 = vunpack.c.l.b16 %v347
    %v736 = vunpack.c.h.b16 %v347
    %v737 = vunpack.c.l.b16 %v348
    %v738 = vunpack.c.h.b16 %v348
    %v739 = vunpack.c.l.b16 %v349
    %v740 = vunpack.c.h.b16 %v349
    %v741 = vunpack.c.l.b16 %v350
    %v742 = vunpack.c.h.b16 %v350
    %v743 = vunpack.c.l.b16 %v351
    %v744 = vunpack.c.h.b16 %v351
    %v745 = vunpack.c.l.b16 %v352
    %v746 = vunpack.c.h.b16 %v352
    %v747 = vunpack.c.l.b16 %v353
    %v748 = vunpack.c.h.b16 %v353
    %v749 = vunpack.c.l.b16 %v354
    %v750 = vunpack.c.h.b16 %v354
    %v751 = vpack.c.b16 %v497, %v495
    %v752 = vpack.c.b16 %v498, %v496
    %v753 = vpack.c.b16 %v501, %v499
    %v754 = vpack.c.b16 %v502, %v500
    %v755 = vpack.c.b16 %v505, %v503
    %v756 = vpack.c.b16 %v506, %v504
    %v757 = vpack.c.b16 %v509, %v507
    %v758 = vpack.c.b16 %v510, %v508
    %v759 = vpack.c.b16 %v513, %v511
    %v760 = vpack.c.b16 %v514, %v512
    %v761 = vpack.c.b16 %v517, %v515
    %v762 = vpack.c.b16 %v518, %v516
    %v763 = vpack.c.b16 %v521, %v519
    %v764 = vpack.c.b16 %v522, %v520
    %v765 = vpack.c.b16 %v525, %v523
    %v766 = vpack.c.b16 %v526, %v524
    %v767 = vpack.c.b16 %v529, %v527
    %v768 = vpack.c.b16 %v530, %v528
    %v769 = vpack.c.b16 %v533, %v531
    %v770 = vpack.c.b16 %v534, %v532
    %v771 = vpack.c.b16 %v537, %v535
    %v772 = vpack.c.b16 %v538, %v536
    %v773 = vpack.c.b16 %v541, %v539
    %v774 = vpack.c.b16 %v542, %v540
    %v775 = vpack.c.b16 %v545, %v543
    %v776 = vpack.c.b16 %v546, %v544
    %v777 = vpack.c.b16 %v549, %v547
    %v778 = vpack.c.b16 %v550, %v548
    %v779 = vpack.c.b16 %v553, %v551
    %v780 = vpack.c.b16 %v554, %v552
    %v781 = vpack.c.b16 %v557, %v555
    %v782 = vpack.c.b16 %v558, %v556
    %v783 = vpack.c.b16 %v561, %v559
    %v784 = vpack.c.b16 %v562, %v560
    %v785 = vpack.c.b16 %v565, %v563
    %v786 = vpack.c.b16 %v566, %v564
    %v787 = vpack.c.b16 %v569, %v567
    %v788 = vpack.c.b16 %v570, %v568
    %v789 = vpack.c.b16 %v573, %v571
    %v790 = vpack.c.b16 %v574, %v572
    %v791 = vpack.c.b16 %v577, %v575
    %v792 = vpack.c.b16 %v578, %v576
    %v793 = vpack.c.b16 %v581, %v579
    %v794 = vpack.c.b16 %v582, %v580
    %v795 = vpack.c.b16 %v585, %v583
    %v796 = vpack.c.b16 %v586, %v584
    %v797 = vpack.c.b16 %v589, %v587
    %v798 = vpack.c.b16 %v590, %v588
    %v799 = vpack.c.b16 %v593, %v591
    %v800 = vpack.c.b16 %v594, %v592
    %v801 = vpack.c.b16 %v597, %v595
    %v802 = vpack.c.b16 %v598, %v596
    %v803 = vpack.c.b16 %v601, %v599
    %v804 = vpack.c.b16 %v602, %v600
    %v805 = vpack.c.b16 %v605, %v603
    %v806 = vpack.c.b16 %v606, %v604
    %v807 = vpack.c.b16 %v609, %v607
    %v808 = vpack.c.b16 %v610, %v608
    %v809 = vpack.c.b16 %v613, %v611
    %v810 = vpack.c.b16 %v614, %v612
    %v811 = vpack.c.b16 %v617, %v615
    %v812 = vpack.c.b16 %v618, %v616
    %v813 = vpack.c.b16 %v621, %v619
    %v814 = vpack.c.b16 %v622, %v620
    %v815 = vpack.c.b16 %v625, %v623
    %v816 = vpack.c.b16 %v626, %v624
    %v817 = vpack.c.b16 %v629, %v627
    %v818 = vpack.c.b16 %v630, %v628
    %v819 = vpack.c.b16 %v633, %v631
    %v820 = vpack.c.b16 %v634, %v632
    %v821 = vpack.c.b16 %v637, %v635
    %v822 = vpack.c.b16 %v638, %v636
    %v823 = vpack.c.b16 %v641, %v639
    %v824 = vpack.c.b16 %v642, %v640
    %v825 = vpack.c.b16 %v645, %v643
    %v826 = vpack.c.b16 %v646, %v644
    %v827 = vpack.c.b16 %v649, %v647
    %v828 = vpack.c.b16 %v650, %v648
    %v829 = vpack.c.b16 %v653, %v651
    %v830 = vpack.c.b16 %v654, %v652
    %v831 = vpack.c.b16 %v657, %v655
    %v832 = vpack.c.b16 %v658, %v656
    %v833 = vpack.c.b16 %v661, %v659
    %v834 = vpack.c.b16 %v662, %v660
    %v835 = vpack.c.b16 %v665, %v663
    %v836 = vpack.c.b16 %v666, %v664
    %v837 = vpack.c.b16 %v669, %v667
    %v838 = vpack.c.b16 %v670, %v668
    %v839 = vpack.c.b16 %v673, %v671
    %v840 = vpack.c.b16 %v674, %v672
    %v841 = vpack.c.b16 %v677, %v675
    %v842 = vpack.c.b16 %v678, %v676
    %v843 = vpack.c.b16 %v681, %v679
    %v844 = vpack.c.b16 %v682, %v680
    %v845 = vpack.c.b16 %v685, %v683
    %v846 = vpack.c.b16 %v686, %v684
    %v847 = vpack.c.b16 %v689, %v687
    %v848 = vpack.c.b16 %v690, %v688
    %v849 = vpack.c.b16 %v693, %v691
    %v850 = vpack.c.b16 %v694, %v692
    %v851 = vpack.c.b16 %v697, %v695
    %v852 = vpack.c.b16 %v698, %v696
    %v853 = vpack.c.b16 %v701, %v699
    %v854 = vpack.c.b16 %v702, %v700
    %v855 = vpack.c.b16 %v705, %v703
    %v856 = vpack.c.b16 %v706, %v704
    %v857 = vpack.c.b16 %v709, %v707
    %v858 = vpack.c.b16 %v710, %v708
    %v859 = vpack.c.b16 %v713, %v711
    %v860 = vpack.c.b16 %v714, %v712
    %v861 = vpack.c.b16 %v717, %v715
    %v862 = vpack.c.b16 %v718, %v716
    %v863 = vpack.c.b16 %v721, %v719
    %v864 = vpack.c.b16 %v722, %v720
    %v865 = vpack.c.b16 %v725, %v723
    %v866 = vpack.c.b16 %v726, %v724
    %v867 = vpack.c.b16 %v729, %v727
    %v868 = vpack.c.b16 %v730, %v728
    %v869 = vpack.c.b16 %v733, %v731
    %v870 = vpack.c.b16 %v734, %v732
    %v871 = vpack.c.b16 %v737, %v735
    %v872 = vpack.c.b16 %v738, %v736
    %v873 = vpack.c.b16 %v741, %v739
    %v874 = vpack.c.b16 %v742, %v740
    %v875 = vpack.c.b16 %v745, %v743
    %v876 = vpack.c.b16 %v746, %v744
    %v877 = vpack.c.b16 %v749, %v747
    %v878 = vpack.c.b16 %v750, %v748
    %1007 = vmatprep.subr.bf16.mxu0 %v752
    %1008 = vmatpush1.bf16.msra.mxu0 %v751
    %1009 = vmatprep.subr.bf16.mxu0 %v754
    %1010 = vmatpush1.bf16.msra.mxu0 %v753
    %1011 = vmatprep.subr.bf16.mxu0 %v756
    %1012 = vmatpush1.bf16.msra.mxu0 %v755
    %1013 = vmatprep.subr.bf16.mxu0 %v758
    %1014 = vmatpush1.bf16.msra.mxu0 %v757
    %1015 = vmatprep.subr.bf16.mxu0 %v760
    %1016 = vmatpush1.bf16.msra.mxu0 %v759
    %1017 = vmatprep.subr.bf16.mxu0 %v762
    %1018 = vmatpush1.bf16.msra.mxu0 %v761
    %1019 = vmatprep.subr.bf16.mxu0 %v764
    %1020 = vmatpush1.bf16.msra.mxu0 %v763
    %1021 = vmatprep.subr.bf16.mxu0 %v766
    %1022 = vmatpush1.bf16.msra.mxu0 %v765
    %1023 = vmatprep.subr.bf16.mxu0 %v768
    %1024 = vmatpush1.bf16.msra.mxu0 %v767
    %1025 = vmatprep.subr.bf16.mxu0 %v770
    %1026 = vmatpush1.bf16.msra.mxu0 %v769
    %1027 = vmatprep.subr.bf16.mxu0 %v772
    %1028 = vmatpush1.bf16.msra.mxu0 %v771
    %1029 = vmatprep.subr.bf16.mxu0 %v774
    %1030 = vmatpush1.bf16.msra.mxu0 %v773
    %1031 = vmatprep.subr.bf16.mxu0 %v776
    %1032 = vmatpush1.bf16.msra.mxu0 %v775
    %1033 = vmatprep.subr.bf16.mxu0 %v778
    %1034 = vmatpush1.bf16.msra.mxu0 %v777
    %1035 = vmatprep.subr.bf16.mxu0 %v780
    %1036 = vmatpush1.bf16.msra.mxu0 %v779
    %1037 = vmatprep.subr.bf16.mxu0 %v782
    %1038 = vmatpush1.bf16.msra.mxu0 %v781
    %1039 = vmatprep.mubr.bf16.mxu0 %v220
    %1040 = vmatmul.mubr.bf16.gmra.mrb[0].mxu0 %v219
    %v1041 = vpop.f32.mrb[0].mxu0
    %v1042 = vadd.f32 %v360, %v1041
    %v1043 = vpop.f32.mrb[0].mxu0
    %v1044 = vadd.f32 %v364, %v1043
    %v1045 = vpop.f32.mrb[0].mxu0
    %v1046 = vadd.f32 %v360, %v1045
    %v1047 = vpop.f32.mrb[0].mxu0
    %v1048 = vadd.f32 %v364, %v1047
    %1049 = vdwg.mxu0
    %1050 = vmatprep.subr.bf16.mxu0 %v784
    %1051 = vmatpush1.bf16.msra.mxu0 %v783
    %1052 = vmatprep.subr.bf16.mxu0 %v786
    %1053 = vmatpush1.bf16.msra.mxu0 %v785
    %1054 = vmatprep.subr.bf16.mxu0 %v788
    %1055 = vmatpush1.bf16.msra.mxu0 %v787
    %1056 = vmatprep.subr.bf16.mxu0 %v790
    %1057 = vmatpush1.bf16.msra.mxu0 %v789
    %1058 = vmatprep.subr.bf16.mxu0 %v792
    %1059 = vmatpush1.bf16.msra.mxu0 %v791
    %1060 = vmatprep.subr.bf16.mxu0 %v794
    %1061 = vmatpush1.bf16.msra.mxu0 %v793
    %1062 = vmatprep.subr.bf16.mxu0 %v796
    %1063 = vmatpush1.bf16.msra.mxu0 %v795
    %1064 = vmatprep.subr.bf16.mxu0 %v798
    %1065 = vmatpush1.bf16.msra.mxu0 %v797
    %1066 = vmatprep.subr.bf16.mxu0 %v800
    %1067 = vmatpush1.bf16.msra.mxu0 %v799
    %1068 = vmatprep.subr.bf16.mxu0 %v802
    %1069 = vmatpush1.bf16.msra.mxu0 %v801
    %1070 = vmatprep.subr.bf16.mxu0 %v804
    %1071 = vmatpush1.bf16.msra.mxu0 %v803
    %1072 = vmatprep.subr.bf16.mxu0 %v806
    %1073 = vmatpush1.bf16.msra.mxu0 %v805
    %1074 = vmatprep.subr.bf16.mxu0 %v808
    %1075 = vmatpush1.bf16.msra.mxu0 %v807
    %1076 = vmatprep.subr.bf16.mxu0 %v810
    %1077 = vmatpush1.bf16.msra.mxu0 %v809
    %1078 = vmatprep.subr.bf16.mxu0 %v812
    %1079 = vmatpush1.bf16.msra.mxu0 %v811
    %1080 = vmatprep.subr.bf16.mxu0 %v814
    %1081 = vmatpush1.bf16.msra.mxu0 %v813
    %1082 = vmatprep.mubr.bf16.mxu0 %v222
    %1083 = vmatmul.mubr.bf16.gmra.mrb[0].mxu0 %v221
    %v1084 = vpop.f32.mrb[0].mxu0
    %v1085 = vadd.f32 %v1042, %v1084
    %v1086 = vpop.f32.mrb[0].mxu0
    %v1087 = vadd.f32 %v1044, %v1086
    %v1088 = vpop.f32.mrb[0].mxu0
    %v1089 = vadd.f32 %v1046, %v1088
    %v1090 = vpop.f32.mrb[0].mxu0
    %v1091 = vadd.f32 %v1048, %v1090
    %1092 = vdwg.mxu0
    %1093 = vmatprep.subr.bf16.mxu0 %v816
    %1094 = vmatpush1.bf16.msra.mxu0 %v815
    %1095 = vmatprep.subr.bf16.mxu0 %v818
    %1096 = vmatpush1.bf16.msra.mxu0 %v817
    %1097 = vmatprep.subr.bf16.mxu0 %v820
    %1098 = vmatpush1.bf16.msra.mxu0 %v819
    %1099 = vmatprep.subr.bf16.mxu0 %v822
    %1100 = vmatpush1.bf16.msra.mxu0 %v821
    %1101 = vmatprep.subr.bf16.mxu0 %v824
    %1102 = vmatpush1.bf16.msra.mxu0 %v823
    %1103 = vmatprep.subr.bf16.mxu0 %v826
    %1104 = vmatpush1.bf16.msra.mxu0 %v825
    %1105 = vmatprep.subr.bf16.mxu0 %v828
    %1106 = vmatpush1.bf16.msra.mxu0 %v827
    %1107 = vmatprep.subr.bf16.mxu0 %v830
    %1108 = vmatpush1.bf16.msra.mxu0 %v829
    %1109 = vmatprep.subr.bf16.mxu0 %v832
    %1110 = vmatpush1.bf16.msra.mxu0 %v831
    %1111 = vmatprep.subr.bf16.mxu0 %v834
    %1112 = vmatpush1.bf16.msra.mxu0 %v833
    %1113 = vmatprep.subr.bf16.mxu0 %v836
    %1114 = vmatpush1.bf16.msra.mxu0 %v835
    %1115 = vmatprep.subr.bf16.mxu0 %v838
    %1116 = vmatpush1.bf16.msra.mxu0 %v837
    %1117 = vmatprep.subr.bf16.mxu0 %v840
    %1118 = vmatpush1.bf16.msra.mxu0 %v839
    %1119 = vmatprep.subr.bf16.mxu0 %v842
    %1120 = vmatpush1.bf16.msra.mxu0 %v841
    %1121 = vmatprep.subr.bf16.mxu0 %v844
    %1122 = vmatpush1.bf16.msra.mxu0 %v843
    %1123 = vmatprep.subr.bf16.mxu0 %v846
    %1124 = vmatpush1.bf16.msra.mxu0 %v845
    %1125 = vmatprep.mubr.bf16.mxu0 %v224
    %1126 = vmatmul.mubr.bf16.gmra.mrb[0].mxu0 %v223
    %v1127 = vpop.f32.mrb[0].mxu0
    %v1128 = vadd.f32 %v1085, %v1127
    %v1129 = vpop.f32.mrb[0].mxu0
    %v1130 = vadd.f32 %v1087, %v1129
    %v1131 = vpop.f32.mrb[0].mxu0
    %v1132 = vadd.f32 %v1089, %v1131
    %v1133 = vpop.f32.mrb[0].mxu0
    %v1134 = vadd.f32 %v1091, %v1133
    %1135 = vdwg.mxu0
    %1136 = vmatprep.subr.bf16.mxu0 %v848
    %1137 = vmatpush1.bf16.msra.mxu0 %v847
    %1138 = vmatprep.subr.bf16.mxu0 %v850
    %1139 = vmatpush1.bf16.msra.mxu0 %v849
    %1140 = vmatprep.subr.bf16.mxu0 %v852
    %1141 = vmatpush1.bf16.msra.mxu0 %v851
    %1142 = vmatprep.subr.bf16.mxu0 %v854
    %1143 = vmatpush1.bf16.msra.mxu0 %v853
    %1144 = vmatprep.subr.bf16.mxu0 %v856
    %1145 = vmatpush1.bf16.msra.mxu0 %v855
    %1146 = vmatprep.subr.bf16.mxu0 %v858
    %1147 = vmatpush1.bf16.msra.mxu0 %v857
    %1148 = vmatprep.subr.bf16.mxu0 %v860
    %1149 = vmatpush1.bf16.msra.mxu0 %v859
    %1150 = vmatprep.subr.bf16.mxu0 %v862
    %1151 = vmatpush1.bf16.msra.mxu0 %v861
    %1152 = vmatprep.subr.bf16.mxu0 %v864
    %1153 = vmatpush1.bf16.msra.mxu0 %v863
    %1154 = vmatprep.subr.bf16.mxu0 %v866
    %1155 = vmatpush1.bf16.msra.mxu0 %v865
    %1156 = vmatprep.subr.bf16.mxu0 %v868
    %1157 = vmatpush1.bf16.msra.mxu0 %v867
    %1158 = vmatprep.subr.bf16.mxu0 %v870
    %1159 = vmatpush1.bf16.msra.mxu0 %v869
    %1160 = vmatprep.subr.bf16.mxu0 %v872
    %1161 = vmatpush1.bf16.msra.mxu0 %v871
    %1162 = vmatprep.subr.bf16.mxu0 %v874
    %1163 = vmatpush1.bf16.msra.mxu0 %v873
    %1164 = vmatprep.subr.bf16.mxu0 %v876
    %1165 = vmatpush1.bf16.msra.mxu0 %v875
    %1166 = vmatprep.subr.bf16.mxu0 %v878
    %1167 = vmatpush1.bf16.msra.mxu0 %v877
    %1168 = vmatprep.mubr.bf16.mxu0 %v226
    %1169 = vmatmul.mubr.bf16.gmra.mrb[0].mxu0 %v225
    %v1170 = vpop.f32.mrb[0].mxu0
    %v1171 = vadd.f32 %v1128, %v1170
    %v1172 = vpop.f32.mrb[0].mxu0
    %v1173 = vadd.f32 %v1130, %v1172
    %v1174 = vpop.f32.mrb[0].mxu0
    %v1175 = vadd.f32 %v1132, %v1174
    %v1176 = vpop.f32.mrb[0].mxu0
    %v1177 = vadd.f32 %v1134, %v1176
    %1178 = vdwg.mxu0
    %v1179 = vmax.f32 %v1171, 0.0
    %v1180 = vmax.f32 %v1173, 0.0
    %v1181 = vmax.f32 %v1175, 0.0
    %v1182 = vmax.f32 %v1177, 0.0
    %v1183 = vpack.c.bf16 %v1181, %v1179
    %v1184 = vpack.c.bf16 %v1182, %v1180
    %v1185 = vld [vmem:[%s3] sm:$0xf]
    %v1186 = vld [vmem:[%s3 + $0x4] sm:$0xf]
    %v1187 = vld [vmem:[%s3 + $0x8] sm:$0xf]
    %v1188 = vld [vmem:[%s3 + $0xc] sm:$0xf]
    %v1189 = vld [vmem:[%s3 + $0x10] sm:$0xf]
    %v1190 = vld [vmem:[%s3 + $0x14] sm:$0xf]
    %v1191 = vld [vmem:[%s3 + $0x18] sm:$0xf]
    %v1192 = vld [vmem:[%s3 + $0x1c] sm:$0xf]
    %v1193 = vld [vmem:[%s3 + $0x20] sm:$0xf]
    %v1194 = vld [vmem:[%s3 + $0x24] sm:$0xf]
    %v1195 = vld [vmem:[%s3 + $0x28] sm:$0xf]
    %v1196 = vld [vmem:[%s3 + $0x2c] sm:$0xf]
    %v1197 = vld [vmem:[%s3 + $0x30] sm:$0xf]
    %v1198 = vld [vmem:[%s3 + $0x34] sm:$0xf]
    %v1199 = vld [vmem:[%s3 + $0x38] sm:$0xf]
    %v1200 = vld [vmem:[%s3 + $0x3c] sm:$0xf]
    %v1201 = vld [vmem:[%s3 + $0x40] sm:$0xf]
    %v1202 = vld [vmem:[%s3 + $0x44] sm:$0xf]
    %v1203 = vld [vmem:[%s3 + $0x48] sm:$0xf]
    %v1204 = vld [vmem:[%s3 + $0x4c] sm:$0xf]
    %v1205 = vld [vmem:[%s3 + $0x50] sm:$0xf]
    %v1206 = vld [vmem:[%s3 + $0x54] sm:$0xf]
    %v1207 = vld [vmem:[%s3 + $0x58] sm:$0xf]
    %v1208 = vld [vmem:[%s3 + $0x5c] sm:$0xf]
    %v1209 = vld [vmem:[%s3 + $0x60] sm:$0xf]
    %v1210 = vld [vmem:[%s3 + $0x64] sm:$0xf]
    %v1211 = vld [vmem:[%s3 + $0x68] sm:$0xf]
    %v1212 = vld [vmem:[%s3 + $0x6c] sm:$0xf]
    %v1213 = vld [vmem:[%s3 + $0x70] sm:$0xf]
    %v1214 = vld [vmem:[%s3 + $0x74] sm:$0xf]
    %v1215 = vld [vmem:[%s3 + $0x78] sm:$0xf]
    %v1216 = vld [vmem:[%s3 + $0x7c] sm:$0xf]
    %v1217 = vld [vmem:[%s4] sm:$0x1]
    %v1219 = vlaneseq
    %v1220 = vshrl.u32 %v1219, 7
    %v1221 = vsub.s32 0, %v1220
    %v1222 = vrot.slane %v1217, %v1221
    %v1256 = vunpack.c.l.b16 %v1185
    %v1257 = vunpack.c.l.b16 %v1186
    %v1258 = vunpack.c.l.b16 %v1187
    %v1259 = vunpack.c.l.b16 %v1188
    %v1260 = vunpack.c.l.b16 %v1189
    %v1261 = vunpack.c.l.b16 %v1190
    %v1262 = vunpack.c.l.b16 %v1191
    %v1263 = vunpack.c.l.b16 %v1192
    %v1264 = vunpack.c.l.b16 %v1193
    %v1265 = vunpack.c.l.b16 %v1194
    %v1266 = vunpack.c.l.b16 %v1195
    %v1267 = vunpack.c.l.b16 %v1196
    %v1268 = vunpack.c.l.b16 %v1197
    %v1269 = vunpack.c.l.b16 %v1198
    %v1270 = vunpack.c.l.b16 %v1199
    %v1271 = vunpack.c.l.b16 %v1200
    %v1272 = vunpack.c.l.b16 %v1201
    %v1273 = vunpack.c.l.b16 %v1202
    %v1274 = vunpack.c.l.b16 %v1203
    %v1275 = vunpack.c.l.b16 %v1204
    %v1276 = vunpack.c.l.b16 %v1205
    %v1277 = vunpack.c.l.b16 %v1206
    %v1278 = vunpack.c.l.b16 %v1207
    %v1279 = vunpack.c.l.b16 %v1208
    %v1280 = vunpack.c.l.b16 %v1209
    %v1281 = vunpack.c.l.b16 %v1210
    %v1282 = vunpack.c.l.b16 %v1211
    %v1283 = vunpack.c.l.b16 %v1212
    %v1284 = vunpack.c.l.b16 %v1213
    %v1285 = vunpack.c.l.b16 %v1214
    %v1286 = vunpack.c.l.b16 %v1215
    %v1287 = vunpack.c.l.b16 %v1216
    %v1288 = vpack.c.b16 %v1257, %v1256
    %v1289 = vpack.c.b16 %v1259, %v1258
    %v1290 = vpack.c.b16 %v1261, %v1260
    %v1291 = vpack.c.b16 %v1263, %v1262
    %v1292 = vpack.c.b16 %v1265, %v1264
    %v1293 = vpack.c.b16 %v1267, %v1266
    %v1294 = vpack.c.b16 %v1269, %v1268
    %v1295 = vpack.c.b16 %v1271, %v1270
    %v1296 = vpack.c.b16 %v1273, %v1272
    %v1297 = vpack.c.b16 %v1275, %v1274
    %v1298 = vpack.c.b16 %v1277, %v1276
    %v1299 = vpack.c.b16 %v1279, %v1278
    %v1300 = vpack.c.b16 %v1281, %v1280
    %v1301 = vpack.c.b16 %v1283, %v1282
    %v1302 = vpack.c.b16 %v1285, %v1284
    %v1303 = vpack.c.b16 %v1287, %v1286
    %1320 = vmatprep.subr.bf16.mxu0 0
    %1321 = vmatpush1.bf16.msra.mxu0 %v1288
    %1322 = vmatprep.subr.bf16.mxu0 0
    %1323 = vmatpush1.bf16.msra.mxu0 %v1289
    %1324 = vmatprep.subr.bf16.mxu0 0
    %1325 = vmatpush1.bf16.msra.mxu0 %v1290
    %1326 = vmatprep.subr.bf16.mxu0 0
    %1327 = vmatpush1.bf16.msra.mxu0 %v1291
    %1328 = vmatprep.subr.bf16.mxu0 0
    %1329 = vmatpush1.bf16.msra.mxu0 %v1292
    %1330 = vmatprep.subr.bf16.mxu0 0
    %1331 = vmatpush1.bf16.msra.mxu0 %v1293
    %1332 = vmatprep.subr.bf16.mxu0 0
    %1333 = vmatpush1.bf16.msra.mxu0 %v1294
    %1334 = vmatprep.subr.bf16.mxu0 0
    %1335 = vmatpush1.bf16.msra.mxu0 %v1295
    %1336 = vmatprep.subr.bf16.mxu0 0
    %1337 = vmatpush1.bf16.msra.mxu0 %v1296
    %1338 = vmatprep.subr.bf16.mxu0 0
    %1339 = vmatpush1.bf16.msra.mxu0 %v1297
    %1340 = vmatprep.subr.bf16.mxu0 0
    %1341 = vmatpush1.bf16.msra.mxu0 %v1298
    %1342 = vmatprep.subr.bf16.mxu0 0
    %1343 = vmatpush1.bf16.msra.mxu0 %v1299
    %1344 = vmatprep.subr.bf16.mxu0 0
    %1345 = vmatpush1.bf16.msra.mxu0 %v1300
    %1346 = vmatprep.subr.bf16.mxu0 0
    %1347 = vmatpush1.bf16.msra.mxu0 %v1301
    %1348 = vmatprep.subr.bf16.mxu0 0
    %1349 = vmatpush1.bf16.msra.mxu0 %v1302
    %1350 = vmatprep.subr.bf16.mxu0 0
    %1351 = vmatpush1.bf16.msra.mxu0 %v1303
    %1352 = vmatprep.mubr.bf16.mxu0 %v1184
    %1353 = vmatmul.mubr.bf16.gmra.mrb[0].mxu0 %v1183
    %v1354 = vpop.f32.mrb[0].mxu0
    %v1355 = vadd.f32 %v1222, %v1354
    %v1356 = vpop.f32.mrb[0].mxu0
    %v1357 = vpop.f32.mrb[0].mxu0
    %v1358 = vadd.f32 %v1222, %v1357
    %v1359 = vpop.f32.mrb[0].mxu0
    %1360 = vdwg.mxu0
    %v1361 = vmax.f32 %v1355, 0.0
    %v1362 = vmax.f32 %v1358, 0.0
    %v1363 = vpack.c.bf16 %v1362, %v1361
    %v1364 = vld [vmem:[%s5] sm:$0xf]
    %v1365 = vld [vmem:[%s5 + $0x4] sm:$0xf]
    %v1366 = vld [vmem:[%s5 + $0x8] sm:$0xf]
    %v1367 = vld [vmem:[%s5 + $0xc] sm:$0xf]
    %v1368 = vld [vmem:[%s5 + $0x10] sm:$0xf]
    %v1369 = vld [vmem:[%s5 + $0x14] sm:$0xf]
    %v1370 = vld [vmem:[%s5 + $0x18] sm:$0xf]
    %v1371 = vld [vmem:[%s5 + $0x1c] sm:$0xf]
    %v1372 = vld [vmem:[%s5 + $0x20] sm:$0xf]
    %v1373 = vld [vmem:[%s5 + $0x24] sm:$0xf]
    %v1374 = vld [vmem:[%s5 + $0x28] sm:$0xf]
    %v1375 = vld [vmem:[%s5 + $0x2c] sm:$0xf]
    %v1376 = vld [vmem:[%s5 + $0x30] sm:$0xf]
    %v1377 = vld [vmem:[%s5 + $0x34] sm:$0xf]
    %v1378 = vld [vmem:[%s5 + $0x38] sm:$0xf]
    %v1379 = vld [vmem:[%s5 + $0x3c] sm:$0xf]
    %v1380 = vld [vmem:[%s6] sm:$0x1]
    %v1382 = vlaneseq
    %v1383 = vshrl.u32 %v1382, 7
    %v1384 = vsub.s32 0, %v1383
    %v1385 = vrot.slane %v1380, %v1384
    %v1403 = vunpack.c.l.b16 %v1364
    %v1404 = vunpack.c.l.b16 %v1365
    %v1405 = vunpack.c.l.b16 %v1366
    %v1406 = vunpack.c.l.b16 %v1367
    %v1407 = vunpack.c.l.b16 %v1368
    %v1408 = vunpack.c.l.b16 %v1369
    %v1409 = vunpack.c.l.b16 %v1370
    %v1410 = vunpack.c.l.b16 %v1371
    %v1411 = vunpack.c.l.b16 %v1372
    %v1412 = vunpack.c.l.b16 %v1373
    %v1413 = vunpack.c.l.b16 %v1374
    %v1414 = vunpack.c.l.b16 %v1375
    %v1415 = vunpack.c.l.b16 %v1376
    %v1416 = vunpack.c.l.b16 %v1377
    %v1417 = vunpack.c.l.b16 %v1378
    %v1418 = vunpack.c.l.b16 %v1379
    %v1419 = vpack.c.b16 %v1404, %v1403
    %v1420 = vpack.c.b16 %v1406, %v1405
    %v1421 = vpack.c.b16 %v1408, %v1407
    %v1422 = vpack.c.b16 %v1410, %v1409
    %v1423 = vpack.c.b16 %v1412, %v1411
    %v1424 = vpack.c.b16 %v1414, %v1413
    %v1425 = vpack.c.b16 %v1416, %v1415
    %v1426 = vpack.c.b16 %v1418, %v1417
    %1435 = vmatprep.subr.bf16.mxu0 0
    %1436 = vmatpush1.bf16.msra.mxu0 %v1419
    %1437 = vmatprep.subr.bf16.mxu0 0
    %1438 = vmatpush1.bf16.msra.mxu0 %v1420
    %1439 = vmatprep.subr.bf16.mxu0 0
    %1440 = vmatpush1.bf16.msra.mxu0 %v1421
    %1441 = vmatprep.subr.bf16.mxu0 0
    %1442 = vmatpush1.bf16.msra.mxu0 %v1422
    %1443 = vmatprep.subr.bf16.mxu0 0
    %1444 = vmatpush1.bf16.msra.mxu0 %v1423
    %1445 = vmatprep.subr.bf16.mxu0 0
    %1446 = vmatpush1.bf16.msra.mxu0 %v1424
    %1447 = vmatprep.subr.bf16.mxu0 0
    %1448 = vmatpush1.bf16.msra.mxu0 %v1425
    %1449 = vmatprep.subr.bf16.mxu0 0
    %1450 = vmatpush1.bf16.msra.mxu0 %v1426
    %1451 = vmatprep.subr.bf16.mxu0 0
    %1452 = vmatpush1.bf16.msra.mxu0 0
    %1453 = vmatprep.subr.bf16.mxu0 0
    %1454 = vmatpush1.bf16.msra.mxu0 0
    %1455 = vmatprep.subr.bf16.mxu0 0
    %1456 = vmatpush1.bf16.msra.mxu0 0
    %1457 = vmatprep.subr.bf16.mxu0 0
    %1458 = vmatpush1.bf16.msra.mxu0 0
    %1459 = vmatprep.subr.bf16.mxu0 0
    %1460 = vmatpush1.bf16.msra.mxu0 0
    %1461 = vmatprep.subr.bf16.mxu0 0
    %1462 = vmatpush1.bf16.msra.mxu0 0
    %1463 = vmatprep.subr.bf16.mxu0 0
    %1464 = vmatpush1.bf16.msra.mxu0 0
    %1465 = vmatprep.subr.bf16.mxu0 0
    %1466 = vmatpush1.bf16.msra.mxu0 0
    %1467 = vmatprep.mubr.bf16.mxu0 0
    %1468 = vmatmul.mubr.bf16.gmra.mrb[0].mxu0 %v1363
    %v1469 = vpop.f32.mrb[0].mxu0
    %v1470 = vadd.f32 %v1385, %v1469
    %v1471 = vpop.f32.mrb[0].mxu0
    %v1472 = vpop.f32.mrb[0].mxu0
    %v1473 = vadd.f32 %v1385, %v1472
    %v1474 = vpop.f32.mrb[0].mxu0
    %1475 = vdwg.mxu0
    %v1476 = vpack.c.bf16 %v1473, %v1470
    %v1478 = vcombine.high %v1476, %v1476
    %v1480 = vunpack.c.l.s4 1966171168
    %v1481 = vunpack.c.0.s8 %v1480
    %v1482 = vlaneseq
    %v1483 = vshrl.u32 %v1482, 7
    %v1484 = vsub.s32 %v1481, %v1483
    %v1485 = vrot.slane %v1476, %v1484
    %v1487 = vunpack.c.l.s4 1966171168
    %v1488 = vunpack.c.0.s8 %v1487
    %v1489 = vlaneseq
    %v1490 = vshrl.u32 %v1489, 7
    %v1491 = vsub.s32 %v1488, %v1490
    %v1492 = vrot.slane %v1478, %v1491
    %v1493 = vcombine.high %v1485, %v1485
    %v1494 = vcombine.high %v1492, %v1492
    %v1496 = vunpack.c.l.s4 1966171168
    %v1497 = vunpack.c.0.s8 %v1496
    %v1498 = vlaneseq
    %v1499 = vshrl.u32 %v1498, 7
    %v1500 = vsub.s32 %v1497, %v1499
    %v1501 = vrot.slane %v1485, %v1500
    %v1503 = vunpack.c.l.s4 1966171168
    %v1504 = vunpack.c.0.s8 %v1503
    %v1505 = vlaneseq
    %v1506 = vshrl.u32 %v1505, 7
    %v1507 = vsub.s32 %v1504, %v1506
    %v1508 = vrot.slane %v1492, %v1507
    %v1510 = vunpack.c.l.s4 1966171168
    %v1511 = vunpack.c.0.s8 %v1510
    %v1512 = vlaneseq
    %v1513 = vshrl.u32 %v1512, 7
    %v1514 = vsub.s32 %v1511, %v1513
    %v1515 = vrot.slane %v1493, %v1514
    %v1517 = vunpack.c.l.s4 1966171168
    %v1518 = vunpack.c.0.s8 %v1517
    %v1519 = vlaneseq
    %v1520 = vshrl.u32 %v1519, 7
    %v1521 = vsub.s32 %v1518, %v1520
    %v1522 = vrot.slane %v1494, %v1521
    %v1523 = vcombine.high %v1501, %v1501
    %v1524 = vcombine.high %v1508, %v1508
    %v1525 = vcombine.high %v1515, %v1515
    %v1526 = vcombine.high %v1522, %v1522
    %1535 = vst [vmem:[#allocation2] sm:$0x1] %v1501
    %1536 = vst [vmem:[#allocation2 + $0x1] sm:$0x1] %v1515
    %1537 = vst [vmem:[#allocation2 + $0x2] sm:$0x1] %v1523
    %1538 = vst [vmem:[#allocation2 + $0x3] sm:$0x1] %v1525
    %1539 = vst [vmem:[#allocation2 + $0x4] sm:$0x1] %v1508
    %1540 = vst [vmem:[#allocation2 + $0x5] sm:$0x1] %v1522
    %1541 = vst [vmem:[#allocation2 + $0x6] sm:$0x1] %v1524
    %1542 = vst [vmem:[#allocation2 + $0x7] sm:$0x1] %v1526
    // Predicated region
    $region30: #{linear_net_forward.1} parent=1 // pred_check
      _
    $region31: #{linear_net_forward.1} parent=1 // pred_check_branch
      %1544 = sbr.rel (0) target = $region33
    $region32: #{linear_net_forward.1} parent=1 // pred_region
      // Predicated region
      $region34: #{linear_net_forward.1} parent=32 // pred_check
        _
      $region35: #{linear_net_forward.1} parent=32 // pred_check_branch
        %1546 = sbr.rel (0) target = $region37
      $region36: #{linear_net_forward.1} parent=32 // pred_region
        // Predicated region
        $region38: #{linear_net_forward.1} parent=36 // pred_check
          _
        $region39: #{linear_net_forward.1} parent=36 // pred_check_branch
          %1548 = sbr.rel target = $region41
        $region40: #{linear_net_forward.1} parent=36 // pred_region
          // Predicated region
          $region53: #{linear_net_forward.1} parent=40 // pred_check
            _
          $region54: #{linear_net_forward.1} parent=40 // pred_check_branch
            %1563 = sbr.rel (0) target = $region56
          $region55: #{linear_net_forward.1} parent=40 // pred_region
            loop: start=0, step=1, limit=1
            $region57: #{linear_net_forward.1} parent=55 // loop_pre_header
              _
            $region58: #{linear_net_forward.1} parent=55 // loop_header
              %s1566 = sphi 0, %s1570
              %p1567 = scmp.ge.s32.totalorder %s1566, 1
              %s1571 = sphi [#allocation2], [#allocation2]
              %s1572 = sphi %s7, %s7
            $region59: #{linear_net_forward.1} parent=55 // loop_header_branch
              %1569 = sbr.rel (%p1567) target = $region63
            $region60: #{linear_net_forward.1} parent=55 // loop_body
              %v1573 = vld [vmem:[%s1571] sm:$0x1]
              %1574 = vst [vmem:[%s1572] sm:$0x1] %v1573
            $region61: #{linear_net_forward.1} parent=55 // loop_footer
              %s1570 = sadd.s32 1, %s1566
            $region62: #{linear_net_forward.1} parent=55 // loop_footer_branch
              %1565 = sbr.rel target = $region58
            $region63: #{linear_net_forward.1} parent=55 // loop_exit
              _
          $region56: #{linear_net_forward.1} parent=40 // pred_fallthru
            _
        $region41: #{linear_net_forward.1} parent=36 // pred_fallthru
          _
        // Predicated region
        $region42: #{linear_net_forward.1} parent=36 // pred_check
          _
        $region43: #{linear_net_forward.1} parent=36 // pred_check_branch
          %1550 = sbr.rel (0) target = $region45
        $region44: #{linear_net_forward.1} parent=36 // pred_region
          loop: start=0, step=1, limit=1
          $region46: #{linear_net_forward.1} parent=44 // loop_pre_header
            _
          $region47: #{linear_net_forward.1} parent=44 // loop_header
            %s1553 = sphi 0, %s1557
            %p1554 = scmp.ge.s32.totalorder %s1553, 1
            %s1558 = sphi [#allocation2], [#allocation2]
            %s1559 = sphi %s7, %s7
          $region48: #{linear_net_forward.1} parent=44 // loop_header_branch
            %1556 = sbr.rel (%p1554) target = $region52
          $region49: #{linear_net_forward.1} parent=44 // loop_body
            %v1560 = vld [vmem:[%s1558] sm:$0x1]
            %1561 = vst [vmem:[%s1559] sm:$0x1] %v1560
          $region50: #{linear_net_forward.1} parent=44 // loop_footer
            %s1557 = sadd.s32 1, %s1553
          $region51: #{linear_net_forward.1} parent=44 // loop_footer_branch
            %1552 = sbr.rel target = $region47
          $region52: #{linear_net_forward.1} parent=44 // loop_exit
            _
        $region45: #{linear_net_forward.1} parent=36 // pred_fallthru
          _
      $region37: #{linear_net_forward.1} parent=32 // pred_fallthru
        _
      %1575 = vnop
    $region33: #{linear_net_forward.1} parent=1 // pred_fallthru
      _
    // Predicated region
    $region64: #{linear_net_forward.1} parent=1 // pred_check
      _
    $region65: #{linear_net_forward.1} parent=1 // pred_check_branch
      %1577 = sbr.rel (0) target = $region67
    $region66: #{linear_net_forward.1} parent=1 // pred_region
      _
    $region67: #{linear_net_forward.1} parent=1 // pred_fallthru
      _

</llo_original>
